<compile_context>
chip_gen: v7x
topology: tpu7x:2x2x1
jax: 0.10.0
libtpu: 0.0.40
codegen_flags: <defaults>
</compile_context>

<pallas_src>
import functools

import jax
import jax.numpy as jnp
from jax.experimental import pallas as pl
from jax.experimental.pallas import tpu as pltpu

LN_EPS = 1e-5
_LANE = 128
_SUBLANE = 8
_VMEM_TILE_BUDGET = 48 * 1024 * 1024   # live tile bytes; safe within v7x's 64 MiB VMEM
_VMEM_LIMIT_BYTES = 56 * 1024 * 1024   # raise the scoped VMEM limit to allow big tiles
_MAX_BLOCK_ROWS = 1024


def _round_up(n, m):
    return ((n + m - 1) // m) * m


def _addnorm_kernel(x_ref, y_ref, *rest, inv_hidden: float):
    """One (block_rows, hidden_p) tile of out = LayerNorm(dropout(Y) + X)."""
    if len(rest) == 4:
        mask_ref, gamma_ref, beta_ref, o_ref = rest
    else:
        mask_ref = None
        gamma_ref, beta_ref, o_ref = rest

    x = x_ref[...].astype(jnp.float32)
    y = y_ref[...]
    if mask_ref is not None:
        # Inverted dropout: mask already holds keep / (1 - p), in the input
        # dtype, so dropout is a single multiply before the upcast.
        y = y * mask_ref[...]
    z = x + y.astype(jnp.float32)

    # One-pass statistics over the true hidden size (padded lanes are zero,
    # so they contribute nothing to either sum).
    mean = jnp.sum(z, axis=-1, keepdims=True) * inv_hidden
    mean_sq = jnp.sum(z * z, axis=-1, keepdims=True) * inv_hidden
    var = jnp.maximum(mean_sq - mean * mean, 0.0)
    inv_std = jax.lax.rsqrt(var + LN_EPS)

    gamma = gamma_ref[...].astype(jnp.float32)   # (1, hidden_p)
    beta = beta_ref[...].astype(jnp.float32)     # (1, hidden_p)
    o_ref[...] = ((z - mean) * inv_std * gamma + beta).astype(o_ref.dtype)


def add_norm(x, y, gamma, beta, *, dropout_rate: float = 0.0, dropout_key=None):
    """AddNorm forward: LayerNorm(dropout(Y) + X) over the last axis.

    x, y: (..., hidden); gamma, beta: (hidden,).
    """
    assert x.shape == y.shape and x.dtype == y.dtype
    hidden = x.shape[-1]
    assert gamma.shape == (hidden,) and beta.shape == (hidden,)
    assert 0.0 <= dropout_rate < 1.0

    use_dropout = dropout_rate > 0.0
    if use_dropout and dropout_key is None:
        dropout_key = jax.random.PRNGKey(0)

    orig_shape = x.shape
    dtype = x.dtype
    itemsize = jnp.dtype(dtype).itemsize

    x2 = x.reshape(-1, hidden)
    y2 = y.reshape(-1, hidden)
    rows = x2.shape[0]

    # Lane-dense hidden: pad to a multiple of 128 (stats use the true hidden).
    hidden_p = _round_up(hidden, _LANE)

    # Row tile: as large as the VMEM budget allows.  Double-buffered x, y,
    # [mask], out tiles in the input dtype plus ~4 fp32 tile-sized temporaries.
    n_big = 3 + (1 if use_dropout else 0)
    per_row_bytes = hidden_p * (2 * n_big * itemsize + 4 * 4)
    br_max = max(_SUBLANE,
                 (_VMEM_TILE_BUDGET // per_row_bytes) // _SUBLANE * _SUBLANE)
    br_max = min(br_max, _MAX_BLOCK_ROWS)
    br = min(br_max, _round_up(rows, _SUBLANE))

    # Pad rows to a multiple of the tile: no ragged last block, no masked
    # stores, and the grid divides evenly.
    rows_p = _round_up(rows, br)
    grid = (rows_p // br,)

    def pad_rowsxhidden(a):
        pr, pc = rows_p - a.shape[0], hidden_p - a.shape[1]
        if pr or pc:
            a = jnp.pad(a, ((0, pr), (0, pc)))
        return a

    def pad_hidden(a):
        if hidden_p != hidden:
            a = jnp.pad(a, (0, hidden_p - hidden))
        return a.reshape(1, hidden_p)

    x2 = pad_rowsxhidden(x2)
    y2 = pad_rowsxhidden(y2)
    gamma2 = pad_hidden(gamma)
    beta2 = pad_hidden(beta)

    row_spec = pl.BlockSpec((br, hidden_p), lambda i: (i, 0))
    vec_spec = pl.BlockSpec((1, hidden_p), lambda i: (0, 0))

    inputs = [x2, y2]
    in_specs = [row_spec, row_spec]
    if use_dropout:
        # TODO(synk): dropout mask is generated with jax.random in the wrapper
        # (inverted-dropout semantics match nn.Dropout, but the RNG stream is
        # not bit-identical to torch's).
        keep = jax.random.bernoulli(dropout_key, p=1.0 - dropout_rate,
                                    shape=(rows, hidden))
        mask = (keep.astype(jnp.float32) *
                (1.0 / (1.0 - dropout_rate))).astype(dtype)
        inputs.append(pad_rowsxhidden(mask))
        in_specs.append(row_spec)
    inputs += [gamma2, beta2]
    in_specs += [vec_spec, vec_spec]

    kernel = functools.partial(_addnorm_kernel, inv_hidden=1.0 / hidden)

    out2 = pl.pallas_call(
        kernel,
        out_shape=jax.ShapeDtypeStruct((rows_p, hidden_p), dtype),
        grid=grid,
        in_specs=in_specs,
        out_specs=row_spec,
        compiler_params=pltpu.CompilerParams(
            dimension_semantics=("parallel",),
            vmem_limit_bytes=_VMEM_LIMIT_BYTES),
    )(*inputs)

    return out2[:rows, :hidden].reshape(orig_shape)


if __name__ == "__main__":
    batch, seq, hidden = 2, 8, 32
    key = jax.random.PRNGKey(0)
    kx, ky, kd = jax.random.split(key, 3)

    x = jax.random.normal(kx, (batch, seq, hidden), dtype=jnp.float32)
    y = jax.random.normal(ky, (batch, seq, hidden), dtype=jnp.float32)

    # nn.LayerNorm default init: weight = ones, bias = zeros (deterministic).
    gamma = jnp.ones((hidden,), dtype=jnp.float32)
    beta = jnp.zeros((hidden,), dtype=jnp.float32)

    # Eval-mode check (dropout off) against a pure-JAX reference.
    out = add_norm(x, y, gamma, beta, dropout_rate=0.0)
    jax.block_until_ready(out)

    z = x + y
    mean = jnp.mean(z, axis=-1, keepdims=True)
    var = jnp.mean((z - mean) ** 2, axis=-1, keepdims=True)
    ref = (z - mean) * jax.lax.rsqrt(var + LN_EPS) * gamma + beta
    assert jnp.allclose(out, ref, atol=1e-4, rtol=1e-5), "mismatch vs reference"

    # Train-mode path (dropout on) to exercise the masked input stream.
    out_drop = add_norm(x, y, gamma, beta, dropout_rate=0.5, dropout_key=kd)
    jax.block_until_ready(out_drop)
    assert out_drop.shape == x.shape

    print("KERNEL_OK")
</pallas_src>

<mosaic_0001>
module attributes {stable_mosaic.version = 11 : i64} {
  func.func @_addnorm_kernel(%arg0: i32, %arg1: memref<16x128xf32, #tpu.memory_space<vmem>>, %arg2: memref<16x128xf32, #tpu.memory_space<vmem>>, %arg3: memref<1x128xf32, #tpu.memory_space<vmem>>, %arg4: memref<1x128xf32, #tpu.memory_space<vmem>>, %arg5: memref<16x128xf32, #tpu.memory_space<vmem>>) attributes {dimension_semantics = [#tpu.dimension_semantics<parallel>], iteration_bounds = array<i64: 1>, scalar_prefetch = 0 : i64, scratch_operands = 0 : i64, tpu.core_type = #tpu.core_type<tc>, window_params = [{transform_indices = @transform_0, window_bounds = array<i64: 16, 128>}, {transform_indices = @transform_1, window_bounds = array<i64: 16, 128>}, {pipeline_mode = #tpu.pipeline_mode<synchronous>, transform_indices = @transform_2, window_bounds = array<i64: 1, 128>}, {pipeline_mode = #tpu.pipeline_mode<synchronous>, transform_indices = @transform_3, window_bounds = array<i64: 1, 128>}, {transform_indices = @transform_4, window_bounds = array<i64: 16, 128>}]} {
    %c0 = arith.constant 0 : index
    %c0_0 = arith.constant 0 : index
    %0 = vector.load %arg1[%c0, %c0_0] : memref<16x128xf32, #tpu.memory_space<vmem>>, vector<16x128xf32>
    %c0_1 = arith.constant 0 : index
    %c0_2 = arith.constant 0 : index
    %1 = vector.load %arg2[%c0_1, %c0_2] : memref<16x128xf32, #tpu.memory_space<vmem>>, vector<16x128xf32>
    %2 = arith.addf %0, %1 : vector<16x128xf32>
    %cst = arith.constant dense<0.000000e+00> : vector<16xf32>
    %3 = vector.multi_reduction <add>, %2, %cst [1] : vector<16x128xf32> to vector<16xf32>
    %4 = vector.shape_cast %3 : vector<16xf32> to vector<16x1xf32>
    %cst_3 = arith.constant 3.125000e-02 : f32
    %5 = vector.broadcast %cst_3 : f32 to vector<16x1xf32>
    %6 = arith.mulf %4, %5 : vector<16x1xf32>
    %7 = arith.mulf %2, %2 : vector<16x128xf32>
    %cst_4 = arith.constant dense<0.000000e+00> : vector<16xf32>
    %8 = vector.multi_reduction <add>, %7, %cst_4 [1] : vector<16x128xf32> to vector<16xf32>
    %9 = vector.shape_cast %8 : vector<16xf32> to vector<16x1xf32>
    %cst_5 = arith.constant 3.125000e-02 : f32
    %10 = vector.broadcast %cst_5 : f32 to vector<16x1xf32>
    %11 = arith.mulf %9, %10 : vector<16x1xf32>
    %12 = arith.mulf %6, %6 : vector<16x1xf32>
    %13 = arith.subf %11, %12 : vector<16x1xf32>
    %cst_6 = arith.constant 0.000000e+00 : f32
    %14 = vector.broadcast %cst_6 : f32 to vector<16x1xf32>
    %15 = arith.maximumf %13, %14 : vector<16x1xf32>
    %cst_7 = arith.constant 9.99999974E-6 : f32
    %16 = vector.broadcast %cst_7 : f32 to vector<16x1xf32>
    %17 = arith.addf %15, %16 : vector<16x1xf32>
    %18 = math.rsqrt %17 : vector<16x1xf32>
    %c0_8 = arith.constant 0 : index
    %c0_9 = arith.constant 0 : index
    %19 = vector.load %arg3[%c0_8, %c0_9] : memref<1x128xf32, #tpu.memory_space<vmem>>, vector<1x128xf32>
    %c0_10 = arith.constant 0 : index
    %c0_11 = arith.constant 0 : index
    %20 = vector.load %arg4[%c0_10, %c0_11] : memref<1x128xf32, #tpu.memory_space<vmem>>, vector<1x128xf32>
    %21 = vector.broadcast %6 : vector<16x1xf32> to vector<16x128xf32>
    %22 = arith.subf %2, %21 : vector<16x128xf32>
    %23 = vector.broadcast %18 : vector<16x1xf32> to vector<16x128xf32>
    %24 = arith.mulf %22, %23 : vector<16x128xf32>
    %25 = vector.broadcast %19 : vector<1x128xf32> to vector<16x128xf32>
    %26 = arith.mulf %24, %25 : vector<16x128xf32>
    %27 = vector.broadcast %20 : vector<1x128xf32> to vector<16x128xf32>
    %28 = arith.addf %26, %27 : vector<16x128xf32>
    %c0_12 = arith.constant 0 : index
    %c0_13 = arith.constant 0 : index
    %29 = vector.load %arg5[%c0_12, %c0_13] : memref<16x128xf32, #tpu.memory_space<vmem>>, vector<16x128xf32>
    tpu.vector_store %arg5[%c0_12, %c0_13], %28 {strides = array<i32>} : memref<16x128xf32, #tpu.memory_space<vmem>>, vector<16x128xf32>,
    return
  }
  func.func @transform_0(%arg0: i32) -> (i32, i32) {
    %c0_i32 = arith.constant 0 : i32
    %c0_i32_0 = arith.constant 0 : i32
    return %arg0, %c0_i32 : i32, i32
  }
  func.func @transform_1(%arg0: i32) -> (i32, i32) {
    %c0_i32 = arith.constant 0 : i32
    %c0_i32_0 = arith.constant 0 : i32
    return %arg0, %c0_i32 : i32, i32
  }
  func.func @transform_2(%arg0: i32) -> (i32, i32) {
    %c0_i32 = arith.constant 0 : i32
    %c0_i32_0 = arith.constant 0 : i32
    %c0_i32_1 = arith.constant 0 : i32
    return %c0_i32, %c0_i32_0 : i32, i32
  }
  func.func @transform_3(%arg0: i32) -> (i32, i32) {
    %c0_i32 = arith.constant 0 : i32
    %c0_i32_0 = arith.constant 0 : i32
    %c0_i32_1 = arith.constant 0 : i32
    return %c0_i32, %c0_i32_0 : i32, i32
  }
  func.func @transform_4(%arg0: i32) -> (i32, i32) {
    %c0_i32 = arith.constant 0 : i32
    %c0_i32_0 = arith.constant 0 : i32
    return %arg0, %c0_i32 : i32, i32
  }
}

</mosaic_0001>

<llo_original>
// kernel: tpu_custom_call.1
$region0: #{tpu_custom_call.1}
  #allocation0 [shape = 'u32[]', space=smem, size = 0x4, offset = 0x4, fixed_abs, tag = 'smem constant byte address 0x4 - core index']
  #allocation1 [shape = 'u32[144,128]{1,0:T(1,128)}', space=vmem, size = 0x12000, scoped, tag = 'internal scratch']
  %s0 = inlined_call_operand.hbm [shape: f32[16,128], index: 0, kind: input, shape index: {}]
  %s1 = inlined_call_operand.hbm [shape: f32[16,128], index: 1, kind: input, shape index: {}]
  %s2 = inlined_call_operand.vmem [shape: f32[1,128], index: 2, kind: input, shape index: {}]
  %s3 = inlined_call_operand.vmem [shape: f32[1,128], index: 3, kind: input, shape index: {}]
  %s4 = inlined_call_operand.hbm [shape: f32[16,128], index: 4, kind: output, shape index: {}]
  %s5 = sld [smem:[#allocation0]]
  $region34: #{tpu_custom_call.1} parent=0
    _
  %s7 = ssub.s32 1, %s5
  %s8 = scalar_select 0, %s7, %s5
  $region1: #{tpu_custom_call.1} parent=0
    #allocation2 [shape = 'u8[8192]{0}', space=vmem, size = 0x2000, scoped, tag = 'input window, operand 0, single buffered']
    #allocation3 [shape = 's32[1]{0}', space=sflag, size = 0x4, scoped, tag = 'scoped memory for tpu_custom_call.1']
    #allocation4 [shape = 's32[1]{0}', space=sflag, size = 0x4, scoped, tag = 'scoped memory for tpu_custom_call.1']
    #allocation5 [shape = 'u8[8192]{0}', space=vmem, size = 0x2000, scoped, tag = 'input window, operand 1, single buffered']
    #allocation6 [shape = 's32[1]{0}', space=sflag, size = 0x4, scoped, tag = 'scoped memory for tpu_custom_call.1']
    #allocation7 [shape = 'u8[8192]{0}', space=vmem, size = 0x2000, scoped, tag = 'output window, operand 0, single buffered']
    %9 = vsyncpa [#allocation3], 0
    %10 = vsyncpa [#allocation6], 0
    %11 = vsyncpa [#allocation4], 0
    // Predicated region
    $region2: #{tpu_custom_call.1} parent=1 // pred_check
      _
    $region3: #{tpu_custom_call.1} parent=1 // pred_check_branch
      %13 = sbr.rel (0) target = $region5
    $region4: #{tpu_custom_call.1} parent=1 // pred_region
      %s15 = ssub.s32 256, 256
      %16 = vsyncadd [#allocation3], %s15
      %s17 = sshll.u32 [#allocation2], 4
      %s18 = int_to_ptr.vmem [resolvable:$true] %s17
      %23 = dma.hbm_to_vmem [thread:$0]  %s0, 256, %s18, [#allocation3], 128, 128, 8
    $region5: #{tpu_custom_call.1} parent=1 // pred_fallthru
      _
    // Predicated region
    $region6: #{tpu_custom_call.1} parent=1 // pred_check
      _
    $region7: #{tpu_custom_call.1} parent=1 // pred_check_branch
      %25 = sbr.rel (0) target = $region9
    $region8: #{tpu_custom_call.1} parent=1 // pred_region
      %s27 = ssub.s32 256, 256
      %28 = vsyncadd [#allocation6], %s27
      %s29 = sshll.u32 [#allocation5], 4
      %s30 = int_to_ptr.vmem [resolvable:$true] %s29
      %35 = dma.hbm_to_vmem [thread:$0]  %s1, 256, %s30, [#allocation6], 128, 128, 8
    $region9: #{tpu_custom_call.1} parent=1 // pred_fallthru
      _
    // Predicated region
    $region10: #{tpu_custom_call.1} parent=1 // pred_check
      _
    $region11: #{tpu_custom_call.1} parent=1 // pred_check_branch
      %37 = sbr.rel (0) target = $region13
    $region12: #{tpu_custom_call.1} parent=1 // pred_region
      _
    $region13: #{tpu_custom_call.1} parent=1 // pred_fallthru
      _
    // Predicated region
    $region14: #{tpu_custom_call.1} parent=1 // pred_check
      _
    $region15: #{tpu_custom_call.1} parent=1 // pred_check_branch
      %39 = sbr.rel (0) target = $region17
    $region16: #{tpu_custom_call.1} parent=1 // pred_region
      _
    $region17: #{tpu_custom_call.1} parent=1 // pred_fallthru
      _
    // Predicated region
    $region18: #{tpu_custom_call.1} parent=1 // pred_check
      _
    $region19: #{tpu_custom_call.1} parent=1 // pred_check_branch
      %41 = sbr.rel (0) target = $region21
    $region20: #{tpu_custom_call.1} parent=1 // pred_region
      %42 = dma.done [#allocation3], 256
    $region21: #{tpu_custom_call.1} parent=1 // pred_fallthru
      _
    // Predicated region
    $region22: #{tpu_custom_call.1} parent=1 // pred_check
      _
    $region23: #{tpu_custom_call.1} parent=1 // pred_check_branch
      %44 = sbr.rel (0) target = $region25
    $region24: #{tpu_custom_call.1} parent=1 // pred_region
      %45 = dma.done [#allocation6], 256
    $region25: #{tpu_custom_call.1} parent=1 // pred_fallthru
      _
    %v46 = vld [vmem:[#allocation2] sm:$0xff]
    %v47 = vld [vmem:[#allocation2 + $0x8] sm:$0xff]
    %v48 = vld [vmem:[#allocation5] sm:$0xff]
    %v49 = vld [vmem:[#allocation5 + $0x8] sm:$0xff]
    %v50 = vadd.f32 %v46, %v48
    %v51 = vadd.f32 %v47, %v49
    %52 = vadd.xlane.f32.xlu0 %v50
    %v53 = vpop.xlane.xlu0 %52
    %54 = vadd.xlane.f32.xlu0 %v51
    %v55 = vpop.xlane.xlu0 %54
    %v56 = vmul.f32 %v53, 0.03125
    %v57 = vmul.f32 %v55, 0.03125
    %v58 = vmul.f32 %v50, %v50
    %v59 = vmul.f32 %v51, %v51
    %60 = vadd.xlane.f32.xlu0 %v58
    %v61 = vpop.xlane.xlu0 %60
    %62 = vadd.xlane.f32.xlu0 %v59
    %v63 = vpop.xlane.xlu0 %62
    %v64 = vmul.f32 %v61, 0.03125
    %v65 = vmul.f32 %v63, 0.03125
    %v66 = vmul.f32 %v56, %v56
    %v67 = vmul.f32 %v57, %v57
    %v68 = vsub.f32 %v64, %v66
    %v69 = vsub.f32 %v65, %v67
    %v70 = vmax.f32 %v68, 0.0
    %v71 = vmax.f32 %v69, 0.0
    %v72 = vadd.f32 %v70, 1e-05
    %v73 = vadd.f32 %v71, 1e-05
    %v74 = vrsqrt.pop %v72
    %v75 = vrsqrt.pop %v73
    %v76 = vld [vmem:[%s2] sm:$0x1]
    %v77 = vld [vmem:[%s3] sm:$0x1]
    %v78 = vsub.f32 %v50, %v56
    %v79 = vsub.f32 %v51, %v57
    %v80 = vmul.f32 %v78, %v74
    %v81 = vmul.f32 %v79, %v75
    %v83 = vlaneseq
    %v84 = vshrl.u32 %v83, 7
    %v85 = vsub.s32 0, %v84
    %v86 = vrot.slane %v76, %v85
    %v88 = vmul.f32 %v80, %v86
    %v89 = vmul.f32 %v81, %v86
    %v91 = vlaneseq
    %v92 = vshrl.u32 %v91, 7
    %v93 = vsub.s32 0, %v92
    %v94 = vrot.slane %v77, %v93
    %v96 = vadd.f32 %v88, %v94
    %v97 = vadd.f32 %v89, %v94
    %98 = vst [vmem:[#allocation7] sm:$0xff] %v96
    %99 = vst [vmem:[#allocation7 + $0x8] sm:$0xff] %v97
    // Predicated region
    $region26: #{tpu_custom_call.1} parent=1 // pred_check
      _
    $region27: #{tpu_custom_call.1} parent=1 // pred_check_branch
      %101 = sbr.rel (0) target = $region29
    $region28: #{tpu_custom_call.1} parent=1 // pred_region
      %s103 = ssub.s32 256, 256
      %104 = vsyncadd [#allocation4], %s103
      %s105 = sshll.u32 [#allocation7], 4
      %s106 = int_to_ptr.vmem [resolvable:$true] %s105
      %111 = dma.vmem_to_hbm [thread:$0]  %s106, 256, %s4, [#allocation4], 128, 128, 8
    $region29: #{tpu_custom_call.1} parent=1 // pred_fallthru
      _
    // Predicated region
    $region30: #{tpu_custom_call.1} parent=1 // pred_check
      _
    $region31: #{tpu_custom_call.1} parent=1 // pred_check_branch
      %113 = sbr.rel (0) target = $region33
    $region32: #{tpu_custom_call.1} parent=1 // pred_region
      %114 = dma.done [#allocation4], 256
    $region33: #{tpu_custom_call.1} parent=1 // pred_fallthru
      _
    %115 = vsyncpa [#allocation3], 1
    %116 = vsyncpa [#allocation6], 1
    %117 = vsyncpa [#allocation4], 1

</llo_original>
